<compile_context>
chip_gen: v7x
topology: tpu7x:2x2x1
jax: 0.10.0
libtpu: 0.0.40
codegen_flags: <defaults>
</compile_context>

<pallas_src>
import functools

import jax
import jax.numpy as jnp
import numpy as np
from jax.experimental import pallas as pl
from jax.experimental.pallas import tpu as pltpu


# ---------------------------------------------------------------------------
# Kernels
# ---------------------------------------------------------------------------

def _pairwise_dist(emb_blk, emb_all, mag_blk, mag_all):
    """sqrt(relu(|e_i|^2 + |e_j|^2 - 2<e_i, e_j>)) for a row block vs all rows.

    The Gram block runs on the MXU in the caller-supplied dtype (bf16 hits the
    native MXU rate, f32 stays exact); accumulation is f32.  Squared magnitudes
    are precomputed once in the wrapper and arrive as (TB,1)/(1,B) f32 inputs.
    """
    sim = jax.lax.dot_general(
        emb_blk, emb_all, (((1,), (1,)), ((), ())),
        preferred_element_type=jnp.float32,
    )  # (TB, B) f32
    return jnp.sqrt(jnp.maximum(mag_blk + mag_all - 2.0 * sim, 0.0))


def _lneg_kernel(emb_blk_ref, emb_all_ref, lab_blk_ref, lab_all_ref,
                 mag_blk_ref, mag_all_ref, lneg_ref, *, margin):
    """Pass 1: l_neg[i] = sum_{k: label[k] != label[i]} exp(margin - dist[i,k])."""
    dist = _pairwise_dist(emb_blk_ref[...], emb_all_ref[...],
                          mag_blk_ref[...], mag_all_ref[...])       # (TB, B)
    neg = lab_blk_ref[...] != lab_all_ref[...]                      # (TB, B)
    neg_exp = jnp.where(neg, jnp.exp(margin - dist), 0.0)
    lneg_ref[...] = jnp.sum(neg_exp, axis=1, keepdims=True)         # (TB, 1)


def _loss_kernel(emb_blk_ref, emb_all_ref, lab_blk_ref, lab_all_ref,
                 mag_blk_ref, mag_all_ref, lneg_blk_ref, lneg_all_ref,
                 loss_ref, *, block_rows):
    """Pass 2: per-row sums of relu(log(l_ni + l_nj) + dist_ij)^2 over j > i
    with label[i] == label[j]."""
    i = pl.program_id(0)
    dist = _pairwise_dist(emb_blk_ref[...], emb_all_ref[...],
                          mag_blk_ref[...], mag_all_ref[...])       # (TB, B)
    tb, b = dist.shape

    # Strict-upper-triangle & same-label mask built from a (TB,1) global row
    # index against a (1,B) lane iota; the comparison broadcasts, so no (TB,B)
    # int32 iotas are materialized.
    row_g = i * block_rows + jax.lax.broadcasted_iota(jnp.int32, (tb, 1), 0)
    col_g = jax.lax.broadcasted_iota(jnp.int32, (1, b), 1)
    eq = lab_blk_ref[...] == lab_all_ref[...]                       # (TB, B)
    pos = jnp.logical_and(eq, col_g > row_g)                        # j > i, same label

    # Rows with no negatives give log(0) = -inf, which the relu clamps to 0 —
    # matching the reference semantics.
    l_n = jnp.log(lneg_blk_ref[...] + lneg_all_ref[...])            # (TB, B)
    term = jnp.maximum(l_n + dist, 0.0)
    loss_ref[...] = jnp.sum(jnp.where(pos, term * term, 0.0),
                            axis=1, keepdims=True)                  # (TB, 1)


# ---------------------------------------------------------------------------
# Tiling / VMEM budgeting
# ---------------------------------------------------------------------------

def _vmem_capacity_bytes():
    """Physical per-core VMEM; conservative (v7x) value if the query fails."""
    try:
        cap = getattr(pltpu.get_tpu_info(), "vmem_capacity_bytes", None)
        if cap:
            return int(cap)
    except Exception:
        pass
    return 64 * 1024 * 1024


def _pick_block_rows(b, d, itemsize, vmem_budget_bytes):
    """Largest row-block size dividing b whose pass-2 working set fits VMEM.

    Accounting: resident (B,D) embedding (counted x2 in case single-buffering
    of invariants is unavailable), double-buffered (TB,D) row block, ~6 live
    (TB,B) f32 temporaries in pass 2 (dist / l_n / hinge / masks), the narrow
    (TB,1)/(1,B) operands padded to full vreg tiles, plus slack.
    """
    def fits(tb):
        emb_all = 2 * b * d * itemsize
        emb_blk = 2 * tb * d * itemsize
        temps = 6 * tb * b * 4
        narrow = 2 * 4 * tb * 128 * 4 + 2 * 6 * 8 * b * 4
        slack = 2 * 1024 * 1024
        return emb_all + emb_blk + temps + narrow + slack <= vmem_budget_bytes

    # Descending candidates; the large ones are multiples of 256 so the
    # v6e/v7x 2x256^2 MXU sees full-height tiles whenever B allows it
    # (128 is only "enough" for v5e's 4x128^2 MXU).
    for tb in (2048, 1536, 1024, 768, 512, 384, 256, 128, 64, 32, 16, 8):
        if b % tb == 0 and fits(tb):
            return tb
    # Single full-height block: always a legal block shape, full MXU rows.
    return b


# ---------------------------------------------------------------------------
# Driver
# ---------------------------------------------------------------------------

def _run_passes(emb, lab_col, lab_row, mag_col, mag_row, margin, tb,
                vmem_limit_bytes, single_buffer_invariants):
    B, D = emb.shape
    nblk = B // tb

    # Grid-invariant operands (index_map constant in i) are requested
    # single-buffered: halves their VMEM footprint, which matters most for the
    # resident (B,D) embedding on v7x's 64 MiB VMEM.
    inv = dict(pipeline_mode=pl.Buffered(1)) if single_buffer_invariants else {}

    emb_blk_spec = pl.BlockSpec((tb, D), lambda i: (i, 0))
    emb_all_spec = pl.BlockSpec((B, D), lambda i: (0, 0), **inv)
    col_blk_spec = pl.BlockSpec((tb, 1), lambda i: (i, 0))
    row_all_spec = pl.BlockSpec((1, B), lambda i: (0, 0), **inv)

    compiler_params = pltpu.CompilerParams(
        dimension_semantics=("parallel",),          # row blocks are independent
        vmem_limit_bytes=vmem_limit_bytes,
    )
    bytes_emb = B * D * emb.dtype.itemsize

    # Pass 1: negative-pair exp sums per row.
    lneg = pl.pallas_call(
        functools.partial(_lneg_kernel, margin=margin),
        out_shape=jax.ShapeDtypeStruct((B, 1), jnp.float32),
        grid=(nblk,),
        in_specs=[emb_blk_spec, emb_all_spec, col_blk_spec, row_all_spec,
                  col_blk_spec, row_all_spec],
        out_specs=col_blk_spec,
        compiler_params=compiler_params,
        cost_estimate=pl.CostEstimate(
            flops=2 * B * B * D, transcendentals=2 * B * B,
            bytes_accessed=2 * bytes_emb + 16 * B),
    )(emb, emb, lab_col, lab_row, mag_col, mag_row)

    # exp(margin - dist) is symmetric => the column-oriented copy of l_neg is a
    # reshape (O(B)), not another O(B^2) reduction.
    lneg_row = lneg.reshape(1, B)

    # Pass 2: per-row hinge^2 sums over the strict upper triangle.
    loss_rows = pl.pallas_call(
        functools.partial(_loss_kernel, block_rows=tb),
        out_shape=jax.ShapeDtypeStruct((B, 1), jnp.float32),
        grid=(nblk,),
        in_specs=[emb_blk_spec, emb_all_spec, col_blk_spec, row_all_spec,
                  col_blk_spec, row_all_spec, col_blk_spec, row_all_spec],
        out_specs=col_blk_spec,
        compiler_params=compiler_params,
        cost_estimate=pl.CostEstimate(
            flops=2 * B * B * D, transcendentals=2 * B * B,
            bytes_accessed=2 * bytes_emb + 24 * B),
    )(emb, emb, lab_col, lab_row, mag_col, mag_row, lneg, lneg_row)

    return jnp.sum(loss_rows)


def lifted_loss(embedding, label, margin):
    B, D = embedding.shape
    margin = float(margin)

    # Generation-aware VMEM budget: ~7/8 of physical per-core VMEM
    # (~112 MiB on v5e/v6e's 128 MiB parts, ~56 MiB on v7x's 64 MiB).
    vmem_limit = int(_vmem_capacity_bytes() * 7 // 8)
    tb = _pick_block_rows(B, D, embedding.dtype.itemsize, vmem_limit)

    # Keep the embedding in its caller-supplied dtype (bf16 -> native MXU rate
    # and half the DMA bytes; f32 stays exact).  Magnitudes are hoisted here:
    # one O(B*D) f32 reduction instead of per-step cast/square/ones-matmul.
    emb = embedding
    emb_f32 = embedding.astype(jnp.float32)
    mag_col = jnp.sum(emb_f32 * emb_f32, axis=1, keepdims=True)   # (B, 1)
    mag_row = mag_col.reshape(1, B)                               # (1, B)

    lab_i32 = label.astype(jnp.int32)
    lab_col = lab_i32.reshape(B, 1)                               # row-block labels
    lab_row = lab_i32.reshape(1, B)                               # lane-dense labels

    # The positive-pair count depends on labels only: exact int32 count of
    # same-label pairs in the strict upper triangle.
    counter = (jnp.sum((lab_col == lab_row).astype(jnp.int32)) - B) // 2

    try:
        total_loss = _run_passes(emb, lab_col, lab_row, mag_col, mag_row,
                                 margin, tb, vmem_limit,
                                 single_buffer_invariants=True)
    except Exception:
        # pl.Buffered(1) single-buffering of grid-invariant operands is not
        # available on this jax build; fall back to default double-buffering.
        total_loss = _run_passes(emb, lab_col, lab_row, mag_col, mag_row,
                                 margin, tb, vmem_limit,
                                 single_buffer_invariants=False)

    # Guard counter == 0 (the PyTorch reference divides by zero); returns 0.0.
    denom = 2.0 * jnp.maximum(counter, 1).astype(jnp.float32)
    return total_loss / denom


# ---------------------------------------------------------------------------
# Reference + test
# ---------------------------------------------------------------------------

def lifted_loss_ref(embedding, label, margin):
    """Pure-numpy port of the PyTorch double loop, used as the correctness oracle."""
    emb = np.asarray(embedding, dtype=np.float64)
    lab = np.asarray(label)
    bsz = emb.shape[0]
    mag = (emb ** 2).sum(1)
    sim = emb @ emb.T
    dist = np.sqrt(np.maximum(mag[:, None] + mag[None, :] - 2.0 * sim, 0.0))
    loss = 0.0
    counter = 0
    for i in range(bsz):
        for j in range(i + 1, bsz):
            if lab[i] == lab[j]:
                l_ni = np.exp(margin - dist[i][lab != lab[i]]).sum()
                l_nj = np.exp(margin - dist[j][lab != lab[j]]).sum()
                l_n = np.log(l_ni + l_nj)
                l_p = dist[i, j]
                loss += max(l_n + l_p, 0.0) ** 2
                counter += 1
    return loss / (2 * counter)


if __name__ == "__main__":
    B, D = 8, 32
    margin = 1.0

    key = jax.random.PRNGKey(0)
    k_emb, _ = jax.random.split(key)
    embedding = jax.random.normal(k_emb, (B, D), dtype=jnp.float32)
    # Labels with repeated classes so positive pairs exist (counter > 0).
    label = jnp.array([0, 1, 0, 1, 2, 2, 0, 1], dtype=jnp.int32)

    # Exact path (f32 MXU passthrough) checked against the f64 reference.
    loss = jax.block_until_ready(lifted_loss(embedding, label, margin))
    ref = lifted_loss_ref(embedding, label, margin)
    np.testing.assert_allclose(np.asarray(loss), ref, rtol=1e-4, atol=1e-4)

    # bf16 fast path (native MXU rate, half the DMA bytes): tolerance-checked
    # against the f32 path so precision regressions are caught.
    loss_bf16 = jax.block_until_ready(
        lifted_loss(embedding.astype(jnp.bfloat16), label, margin))
    assert np.isfinite(np.asarray(loss_bf16))
    np.testing.assert_allclose(np.asarray(loss_bf16), np.asarray(loss),
                               rtol=1e-1, atol=1e-1)

    print("KERNEL_OK")
</pallas_src>

<mosaic_0001>
module attributes {stable_mosaic.version = 11 : i64} {
  func.func @_lneg_kernel(%arg0: i32, %arg1: memref<8x32xf32, #tpu.memory_space<vmem>>, %arg2: memref<8x32xf32, #tpu.memory_space<vmem>>, %arg3: memref<8x1xi32, #tpu.memory_space<vmem>>, %arg4: memref<1x8xi32, #tpu.memory_space<vmem>>, %arg5: memref<8x1xf32, #tpu.memory_space<vmem>>, %arg6: memref<1x8xf32, #tpu.memory_space<vmem>>, %arg7: memref<8x1xf32, #tpu.memory_space<vmem>>) attributes {dimension_semantics = [#tpu.dimension_semantics<parallel>], iteration_bounds = array<i64: 1>, scalar_prefetch = 0 : i64, scratch_operands = 0 : i64, tpu.core_type = #tpu.core_type<tc>, window_params = [{transform_indices = @transform_0, window_bounds = array<i64: 8, 32>}, {pipeline_mode = #tpu.pipeline_mode<synchronous>, transform_indices = @transform_1, window_bounds = array<i64: 8, 32>}, {transform_indices = @transform_2, window_bounds = array<i64: 8, 1>}, {pipeline_mode = #tpu.pipeline_mode<synchronous>, transform_indices = @transform_3, window_bounds = array<i64: 1, 8>}, {transform_indices = @transform_4, window_bounds = array<i64: 8, 1>}, {pipeline_mode = #tpu.pipeline_mode<synchronous>, transform_indices = @transform_5, window_bounds = array<i64: 1, 8>}, {transform_indices = @transform_6, window_bounds = array<i64: 8, 1>}]} {
    %c0 = arith.constant 0 : index
    %c0_0 = arith.constant 0 : index
    %0 = vector.load %arg1[%c0, %c0_0] : memref<8x32xf32, #tpu.memory_space<vmem>>, vector<8x32xf32>
    %c0_1 = arith.constant 0 : index
    %c0_2 = arith.constant 0 : index
    %1 = vector.load %arg2[%c0_1, %c0_2] : memref<8x32xf32, #tpu.memory_space<vmem>>, vector<8x32xf32>
    %c0_3 = arith.constant 0 : index
    %c0_4 = arith.constant 0 : index
    %2 = vector.load %arg5[%c0_3, %c0_4] : memref<8x1xf32, #tpu.memory_space<vmem>>, vector<8x1xf32>
    %c0_5 = arith.constant 0 : index
    %c0_6 = arith.constant 0 : index
    %3 = vector.load %arg6[%c0_5, %c0_6] : memref<1x8xf32, #tpu.memory_space<vmem>>, vector<1x8xf32>
    %cst = arith.constant dense<0.000000e+00> : vector<8x8xf32>
    %4 = tpu.matmul %0, %1, %cst {dimension_numbers = #tpu.dot_dimension_numbers<[1], [1], [0], [0], [0, 0, 1, 0], [], []>} : vector<8x32xf32>, vector<8x32xf32>, vector<8x8xf32> -> vector<8x8xf32>
    %5 = vector.broadcast %2 : vector<8x1xf32> to vector<8x8xf32>
    %6 = vector.broadcast %3 : vector<1x8xf32> to vector<8x8xf32>
    %7 = arith.addf %5, %6 : vector<8x8xf32>
    %cst_7 = arith.constant 2.000000e+00 : f32
    %8 = vector.broadcast %cst_7 : f32 to vector<8x8xf32>
    %9 = arith.mulf %8, %4 : vector<8x8xf32>
    %10 = arith.subf %7, %9 : vector<8x8xf32>
    %cst_8 = arith.constant 0.000000e+00 : f32
    %11 = vector.broadcast %cst_8 : f32 to vector<8x8xf32>
    %12 = arith.maximumf %10, %11 : vector<8x8xf32>
    %13 = math.sqrt %12 : vector<8x8xf32>
    %c0_9 = arith.constant 0 : index
    %c0_10 = arith.constant 0 : index
    %14 = vector.load %arg3[%c0_9, %c0_10] : memref<8x1xi32, #tpu.memory_space<vmem>>, vector<8x1xi32>
    %c0_11 = arith.constant 0 : index
    %c0_12 = arith.constant 0 : index
    %15 = vector.load %arg4[%c0_11, %c0_12] : memref<1x8xi32, #tpu.memory_space<vmem>>, vector<1x8xi32>
    %16 = vector.broadcast %14 : vector<8x1xi32> to vector<8x8xi32>
    %17 = vector.broadcast %15 : vector<1x8xi32> to vector<8x8xi32>
    %18 = arith.cmpi ne, %16, %17 : vector<8x8xi32>
    %cst_13 = arith.constant 1.000000e+00 : f32
    %19 = vector.broadcast %cst_13 : f32 to vector<8x8xf32>
    %20 = arith.subf %19, %13 : vector<8x8xf32>
    %21 = math.exp %20 : vector<8x8xf32>
    %cst_14 = arith.constant 0.000000e+00 : f32
    %22 = vector.broadcast %cst_14 : f32 to vector<8x8xf32>
    %23 = arith.select %18, %21, %22 : vector<8x8xi1>, vector<8x8xf32>
    %cst_15 = arith.constant dense<0.000000e+00> : vector<8xf32>
    %24 = vector.multi_reduction <add>, %23, %cst_15 [1] : vector<8x8xf32> to vector<8xf32>
    %25 = vector.shape_cast %24 : vector<8xf32> to vector<8x1xf32>
    %c0_16 = arith.constant 0 : index
    %c0_17 = arith.constant 0 : index
    %26 = vector.load %arg7[%c0_16, %c0_17] : memref<8x1xf32, #tpu.memory_space<vmem>>, vector<8x1xf32>
    tpu.vector_store %arg7[%c0_16, %c0_17], %25 {strides = array<i32>} : memref<8x1xf32, #tpu.memory_space<vmem>>, vector<8x1xf32>,
    return
  }
  func.func @transform_0(%arg0: i32) -> (i32, i32) {
    %c0_i32 = arith.constant 0 : i32
    %c0_i32_0 = arith.constant 0 : i32
    return %arg0, %c0_i32 : i32, i32
  }
  func.func @transform_1(%arg0: i32) -> (i32, i32) {
    %c0_i32 = arith.constant 0 : i32
    %c0_i32_0 = arith.constant 0 : i32
    %c0_i32_1 = arith.constant 0 : i32
    return %c0_i32, %c0_i32_0 : i32, i32
  }
  func.func @transform_2(%arg0: i32) -> (i32, i32) {
    %c0_i32 = arith.constant 0 : i32
    %c0_i32_0 = arith.constant 0 : i32
    return %arg0, %c0_i32 : i32, i32
  }
  func.func @transform_3(%arg0: i32) -> (i32, i32) {
    %c0_i32 = arith.constant 0 : i32
    %c0_i32_0 = arith.constant 0 : i32
    %c0_i32_1 = arith.constant 0 : i32
    return %c0_i32, %c0_i32_0 : i32, i32
  }
  func.func @transform_4(%arg0: i32) -> (i32, i32) {
    %c0_i32 = arith.constant 0 : i32
    %c0_i32_0 = arith.constant 0 : i32
    return %arg0, %c0_i32 : i32, i32
  }
  func.func @transform_5(%arg0: i32) -> (i32, i32) {
    %c0_i32 = arith.constant 0 : i32
    %c0_i32_0 = arith.constant 0 : i32
    %c0_i32_1 = arith.constant 0 : i32
    return %c0_i32, %c0_i32_0 : i32, i32
  }
  func.func @transform_6(%arg0: i32) -> (i32, i32) {
    %c0_i32 = arith.constant 0 : i32
    %c0_i32_0 = arith.constant 0 : i32
    return %arg0, %c0_i32 : i32, i32
  }
}

module attributes {stable_mosaic.version = 11 : i64} {
  func.func @_lneg_kernel(%arg0: i32, %arg1: memref<8x32xf32, #tpu.memory_space<vmem>>, %arg2: memref<8x32xf32, #tpu.memory_space<vmem>>, %arg3: memref<8x1xi32, #tpu.memory_space<vmem>>, %arg4: memref<1x8xi32, #tpu.memory_space<vmem>>, %arg5: memref<8x1xf32, #tpu.memory_space<vmem>>, %arg6: memref<1x8xf32, #tpu.memory_space<vmem>>, %arg7: memref<8x1xf32, #tpu.memory_space<vmem>>) attributes {dimension_semantics = [#tpu.dimension_semantics<parallel>], iteration_bounds = array<i64: 1>, scalar_prefetch = 0 : i64, scratch_operands = 0 : i64, tpu.core_type = #tpu.core_type<tc>, window_params = [{transform_indices = @transform_0, window_bounds = array<i64: 8, 32>}, {pipeline_mode = #tpu.pipeline_mode<synchronous>, transform_indices = @transform_1, window_bounds = array<i64: 8, 32>}, {transform_indices = @transform_2, window_bounds = array<i64: 8, 1>}, {pipeline_mode = #tpu.pipeline_mode<synchronous>, transform_indices = @transform_3, window_bounds = array<i64: 1, 8>}, {transform_indices = @transform_4, window_bounds = array<i64: 8, 1>}, {pipeline_mode = #tpu.pipeline_mode<synchronous>, transform_indices = @transform_5, window_bounds = array<i64: 1, 8>}, {transform_indices = @transform_6, window_bounds = array<i64: 8, 1>}]} {
    %c0 = arith.constant 0 : index
    %c0_0 = arith.constant 0 : index
    %0 = vector.load %arg1[%c0, %c0_0] : memref<8x32xf32, #tpu.memory_space<vmem>>, vector<8x32xf32>
    %c0_1 = arith.constant 0 : index
    %c0_2 = arith.constant 0 : index
    %1 = vector.load %arg2[%c0_1, %c0_2] : memref<8x32xf32, #tpu.memory_space<vmem>>, vector<8x32xf32>
    %c0_3 = arith.constant 0 : index
    %c0_4 = arith.constant 0 : index
    %2 = vector.load %arg5[%c0_3, %c0_4] : memref<8x1xf32, #tpu.memory_space<vmem>>, vector<8x1xf32>
    %c0_5 = arith.constant 0 : index
    %c0_6 = arith.constant 0 : index
    %3 = vector.load %arg6[%c0_5, %c0_6] : memref<1x8xf32, #tpu.memory_space<vmem>>, vector<1x8xf32>
    %cst = arith.constant dense<0.000000e+00> : vector<8x8xf32>
    %4 = tpu.matmul %0, %1, %cst {dimension_numbers = #tpu.dot_dimension_numbers<[1], [1], [0], [0], [0, 0, 1, 0], [], []>} : vector<8x32xf32>, vector<8x32xf32>, vector<8x8xf32> -> vector<8x8xf32>
    %5 = vector.broadcast %2 : vector<8x1xf32> to vector<8x8xf32>
    %6 = vector.broadcast %3 : vector<1x8xf32> to vector<8x8xf32>
    %7 = arith.addf %5, %6 : vector<8x8xf32>
    %cst_7 = arith.constant 2.000000e+00 : f32
    %8 = vector.broadcast %cst_7 : f32 to vector<8x8xf32>
    %9 = arith.mulf %8, %4 : vector<8x8xf32>
    %10 = arith.subf %7, %9 : vector<8x8xf32>
    %cst_8 = arith.constant 0.000000e+00 : f32
    %11 = vector.broadcast %cst_8 : f32 to vector<8x8xf32>
    %12 = arith.maximumf %10, %11 : vector<8x8xf32>
    %13 = math.sqrt %12 : vector<8x8xf32>
    %c0_9 = arith.constant 0 : index
    %c0_10 = arith.constant 0 : index
    %14 = vector.load %arg3[%c0_9, %c0_10] : memref<8x1xi32, #tpu.memory_space<vmem>>, vector<8x1xi32>
    %c0_11 = arith.constant 0 : index
    %c0_12 = arith.constant 0 : index
    %15 = vector.load %arg4[%c0_11, %c0_12] : memref<1x8xi32, #tpu.memory_space<vmem>>, vector<1x8xi32>
    %16 = vector.broadcast %14 : vector<8x1xi32> to vector<8x8xi32>
    %17 = vector.broadcast %15 : vector<1x8xi32> to vector<8x8xi32>
    %18 = arith.cmpi ne, %16, %17 : vector<8x8xi32>
    %cst_13 = arith.constant 1.000000e+00 : f32
    %19 = vector.broadcast %cst_13 : f32 to vector<8x8xf32>
    %20 = arith.subf %19, %13 : vector<8x8xf32>
    %21 = math.exp %20 : vector<8x8xf32>
    %cst_14 = arith.constant 0.000000e+00 : f32
    %22 = vector.broadcast %cst_14 : f32 to vector<8x8xf32>
    %23 = arith.select %18, %21, %22 : vector<8x8xi1>, vector<8x8xf32>
    %cst_15 = arith.constant dense<0.000000e+00> : vector<8xf32>
    %24 = vector.multi_reduction <add>, %23, %cst_15 [1] : vector<8x8xf32> to vector<8xf32>
    %25 = vector.shape_cast %24 : vector<8xf32> to vector<8x1xf32>
    %c0_16 = arith.constant 0 : index
    %c0_17 = arith.constant 0 : index
    %26 = vector.load %arg7[%c0_16, %c0_17] : memref<8x1xf32, #tpu.memory_space<vmem>>, vector<8x1xf32>
    tpu.vector_store %arg7[%c0_16, %c0_17], %25 {strides = array<i32>} : memref<8x1xf32, #tpu.memory_space<vmem>>, vector<8x1xf32>,
    return
  }
  func.func @transform_0(%arg0: i32) -> (i32, i32) {
    %c0_i32 = arith.constant 0 : i32
    %c0_i32_0 = arith.constant 0 : i32
    return %arg0, %c0_i32 : i32, i32
  }
  func.func @transform_1(%arg0: i32) -> (i32, i32) {
    %c0_i32 = arith.constant 0 : i32
    %c0_i32_0 = arith.constant 0 : i32
    %c0_i32_1 = arith.constant 0 : i32
    return %c0_i32, %c0_i32_0 : i32, i32
  }
  func.func @transform_2(%arg0: i32) -> (i32, i32) {
    %c0_i32 = arith.constant 0 : i32
    %c0_i32_0 = arith.constant 0 : i32
    return %arg0, %c0_i32 : i32, i32
  }
  func.func @transform_3(%arg0: i32) -> (i32, i32) {
    %c0_i32 = arith.constant 0 : i32
    %c0_i32_0 = arith.constant 0 : i32
    %c0_i32_1 = arith.constant 0 : i32
    return %c0_i32, %c0_i32_0 : i32, i32
  }
  func.func @transform_4(%arg0: i32) -> (i32, i32) {
    %c0_i32 = arith.constant 0 : i32
    %c0_i32_0 = arith.constant 0 : i32
    return %arg0, %c0_i32 : i32, i32
  }
  func.func @transform_5(%arg0: i32) -> (i32, i32) {
    %c0_i32 = arith.constant 0 : i32
    %c0_i32_0 = arith.constant 0 : i32
    %c0_i32_1 = arith.constant 0 : i32
    return %c0_i32, %c0_i32_0 : i32, i32
  }
  func.func @transform_6(%arg0: i32) -> (i32, i32) {
    %c0_i32 = arith.constant 0 : i32
    %c0_i32_0 = arith.constant 0 : i32
    return %arg0, %c0_i32 : i32, i32
  }
}

</mosaic_0001>

<llo_original>
// kernel: tpu_custom_call.1
$region0: #{tpu_custom_call.1}
  #allocation0 [shape = 'u32[]', space=smem, size = 0x4, offset = 0x4, fixed_abs, tag = 'smem constant byte address 0x4 - core index']
  #allocation1 [shape = 'u32[144,128]{1,0:T(1,128)}', space=vmem, size = 0x12000, scoped, tag = 'internal scratch']
  %s0 = inlined_call_operand.vmem [shape: f32[8,32], index: 0, kind: input, shape index: {}]
  %s1 = inlined_call_operand.vmem [shape: f32[8,32], index: 1, kind: input, shape index: {}]
  %s2 = inlined_call_operand.vmem [shape: s32[8,1], index: 2, kind: input, shape index: {}]
  %s3 = inlined_call_operand.vmem [shape: s32[1,8], index: 3, kind: input, shape index: {}]
  %s4 = inlined_call_operand.vmem [shape: f32[8,1], index: 4, kind: input, shape index: {}]
  %s5 = inlined_call_operand.vmem [shape: f32[1,8], index: 5, kind: input, shape index: {}]
  %s6 = inlined_call_operand.vmem [shape: f32[8,1], index: 6, kind: output, shape index: {}]
  %s7 = sld [smem:[#allocation0]]
  $region34: #{tpu_custom_call.1} parent=0
    _
  %s9 = ssub.s32 1, %s7
  %s10 = scalar_select 0, %s9, %s7
  // Predicated region
  $region2: #{tpu_custom_call.1} parent=0 // pred_check
    _
  $region3: #{tpu_custom_call.1} parent=0 // pred_check_branch
    %12 = sbr.rel (0) target = $region5
  $region4: #{tpu_custom_call.1} parent=0 // pred_region
    _
  $region5: #{tpu_custom_call.1} parent=0 // pred_fallthru
    _
  // Predicated region
  $region6: #{tpu_custom_call.1} parent=0 // pred_check
    _
  $region7: #{tpu_custom_call.1} parent=0 // pred_check_branch
    %14 = sbr.rel (0) target = $region9
  $region8: #{tpu_custom_call.1} parent=0 // pred_region
    _
  $region9: #{tpu_custom_call.1} parent=0 // pred_fallthru
    _
  // Predicated region
  $region10: #{tpu_custom_call.1} parent=0 // pred_check
    _
  $region11: #{tpu_custom_call.1} parent=0 // pred_check_branch
    %16 = sbr.rel (0) target = $region13
  $region12: #{tpu_custom_call.1} parent=0 // pred_region
    _
  $region13: #{tpu_custom_call.1} parent=0 // pred_fallthru
    _
  // Predicated region
  $region14: #{tpu_custom_call.1} parent=0 // pred_check
    _
  $region15: #{tpu_custom_call.1} parent=0 // pred_check_branch
    %18 = sbr.rel (0) target = $region17
  $region16: #{tpu_custom_call.1} parent=0 // pred_region
    _
  $region17: #{tpu_custom_call.1} parent=0 // pred_fallthru
    _
  // Predicated region
  $region18: #{tpu_custom_call.1} parent=0 // pred_check
    _
  $region19: #{tpu_custom_call.1} parent=0 // pred_check_branch
    %20 = sbr.rel (0) target = $region21
  $region20: #{tpu_custom_call.1} parent=0 // pred_region
    _
  $region21: #{tpu_custom_call.1} parent=0 // pred_fallthru
    _
  // Predicated region
  $region22: #{tpu_custom_call.1} parent=0 // pred_check
    _
  $region23: #{tpu_custom_call.1} parent=0 // pred_check_branch
    %22 = sbr.rel (0) target = $region25
  $region24: #{tpu_custom_call.1} parent=0 // pred_region
    _
  $region25: #{tpu_custom_call.1} parent=0 // pred_fallthru
    _
  %v23 = vld [vmem:[%s0] sm:$0xff]
  %v24 = vld [vmem:[%s1] sm:$0xff]
  %v25 = vld [vmem:[%s4] sm:$0xff]
  %v26 = vld [vmem:[%s5] sm:$0x1]
  %vm27 = vcmask 261120
  %v29 = vsel %vm27, %v23, 0
  %v32 = vsel %vm27, %v24, 0
  %34 = vmatprep.subr.mxu0 0.0
  %35 = vmatpush1.xpose.msra.mxu0 %v32
  %36 = vmatprep.subr.mxu0 0.0
  %37 = vmatpush1.xpose.msra.mxu0 0.0
  %38 = vmatprep.subr.mxu0 0.0
  %39 = vmatpush1.xpose.msra.mxu0 0.0
  %40 = vmatprep.subr.mxu0 0.0
  %41 = vmatpush1.xpose.msra.mxu0 0.0
  %42 = vmatprep.subr.mxu0 0.0
  %43 = vmatpush1.xpose.msra.mxu0 0.0
  %44 = vmatprep.subr.mxu0 0.0
  %45 = vmatpush1.xpose.msra.mxu0 0.0
  %46 = vmatprep.subr.mxu0 0.0
  %47 = vmatpush1.xpose.msra.mxu0 0.0
  %48 = vmatprep.subr.mxu0 0.0
  %49 = vmatpush1.xpose.msra.mxu0 0.0
  %50 = vmatprep.subr.mxu0 0.0
  %51 = vmatpush1.xpose.msra.mxu0 0.0
  %52 = vmatprep.subr.mxu0 0.0
  %53 = vmatpush1.xpose.msra.mxu0 0.0
  %54 = vmatprep.subr.mxu0 0.0
  %55 = vmatpush1.xpose.msra.mxu0 0.0
  %56 = vmatprep.subr.mxu0 0.0
  %57 = vmatpush1.xpose.msra.mxu0 0.0
  %58 = vmatprep.subr.mxu0 0.0
  %59 = vmatpush1.xpose.msra.mxu0 0.0
  %60 = vmatprep.subr.mxu0 0.0
  %61 = vmatpush1.xpose.msra.mxu0 0.0
  %62 = vmatprep.subr.mxu0 0.0
  %63 = vmatpush1.xpose.msra.mxu0 0.0
  %64 = vmatprep.subr.mxu0 0.0
  %65 = vmatpush1.xpose.msra.mxu0 0.0
  %66 = vmatprep.subr.mxu0 0.0
  %67 = vmatpush1.xpose.msra.mxu0 0.0
  %68 = vmatprep.subr.mxu0 0.0
  %69 = vmatpush1.xpose.msra.mxu0 0.0
  %70 = vmatprep.subr.mxu0 0.0
  %71 = vmatpush1.xpose.msra.mxu0 0.0
  %72 = vmatprep.subr.mxu0 0.0
  %73 = vmatpush1.xpose.msra.mxu0 0.0
  %74 = vmatprep.subr.mxu0 0.0
  %75 = vmatpush1.xpose.msra.mxu0 0.0
  %76 = vmatprep.subr.mxu0 0.0
  %77 = vmatpush1.xpose.msra.mxu0 0.0
  %78 = vmatprep.subr.mxu0 0.0
  %79 = vmatpush1.xpose.msra.mxu0 0.0
  %80 = vmatprep.subr.mxu0 0.0
  %81 = vmatpush1.xpose.msra.mxu0 0.0
  %82 = vmatprep.subr.mxu0 0.0
  %83 = vmatpush1.xpose.msra.mxu0 0.0
  %84 = vmatprep.subr.mxu0 0.0
  %85 = vmatpush1.xpose.msra.mxu0 0.0
  %86 = vmatprep.subr.mxu0 0.0
  %87 = vmatpush1.xpose.msra.mxu0 0.0
  %88 = vmatprep.subr.mxu0 0.0
  %89 = vmatpush1.xpose.msra.mxu0 0.0
  %90 = vmatprep.subr.mxu0 0.0
  %91 = vmatpush1.xpose.msra.mxu0 0.0
  %92 = vmatprep.subr.mxu0 0.0
  %93 = vmatpush1.xpose.msra.mxu0 0.0
  %94 = vmatprep.subr.mxu0 0.0
  %95 = vmatpush1.xpose.msra.mxu0 0.0
  %96 = vmatprep.subr.mxu0 0.0
  %97 = vmatpush1.xpose.msra.mxu0 0.0
  %98 = vmatprep.mubr.f32.mxu0 0.0
  %99 = vmatmul.mubr.f32.gmra.mrb[0].mxu0 %v29
  %v100 = vpop.f32.mrb[0].mxu0
  %v101 = vadd.f32 0.0, %v100
  %v102 = vpop.f32.mrb[0].mxu0
  %103 = vdwg.mxu0
  %105 = vset.pattern.permute.xlu0 0
  %106 = vperm.xlu0 %105, %v25
  %v107 = vpop.permute.xlu0 %106
  %v110 = vlaneseq
  %v111 = vshrl.u32 %v110, 7
  %v112 = vsub.s32 0, %v111
  %v113 = vrot.slane %v26, %v112
  %v115 = vadd.f32 %v107, %v113
  %v116 = vmul.f32 %v101, 2.0
  %v117 = vsub.f32 %v115, %v116
  %v118 = vmax.f32 %v117, 0.0
  %v119 = vrsqrt.pop %v118
  %v120 = vmul.f32 %v118, %v119
  %vm121 = vcmp.eq.f32.partialorder %v118, inf
  %v122 = vsel %vm121, %v118, %v120
  %vm123 = vcmp.eq.f32.partialorder %v118, 0.0
  %v124 = vand.u32 %v118, 2147483648
  %v125 = vsel %vm123, %v124, %v122
  %v126 = vld [vmem:[%s2] sm:$0xff]
  %v127 = vld [vmem:[%s3] sm:$0x1]
  %128 = vset.pattern.permute.xlu0 0
  %129 = vperm.xlu0 %128, %v126
  %v130 = vpop.permute.xlu0 %129
  %v131 = vlaneseq
  %v132 = vshrl.u32 %v131, 7
  %v133 = vsub.s32 0, %v132
  %v134 = vrot.slane %v127, %v133
  %vm135 = vcmp.ne.s32.totalorder %v130, %v134
  %v136 = vsub.f32 1.0, %v125
  %v137 = vmul.f32 %v136, 1.442695
  %v138 = vpow.pop %v137
  %v139 = vsel %vm135, %v138, 0.0
  %vm140 = vcmask 64512
  %v141 = vsel %vm140, %v139, 0.0
  %142 = vadd.xlane.f32.xlu0 %v141
  %v143 = vpop.xlane.xlu0 %142
  %vm144 = vcmask 7168
  %145 = vst.msk [vmem:[%s6] sm:$0xff] %vm144, %v143
  // Predicated region
  $region26: #{tpu_custom_call.1} parent=0 // pred_check
    _
  $region27: #{tpu_custom_call.1} parent=0 // pred_check_branch
    %147 = sbr.rel (0) target = $region29
  $region28: #{tpu_custom_call.1} parent=0 // pred_region
    _
  $region29: #{tpu_custom_call.1} parent=0 // pred_fallthru
    _
  // Predicated region
  $region30: #{tpu_custom_call.1} parent=0 // pred_check
    _
  $region31: #{tpu_custom_call.1} parent=0 // pred_check_branch
    %149 = sbr.rel (0) target = $region33
  $region32: #{tpu_custom_call.1} parent=0 // pred_region
    _
  $region33: #{tpu_custom_call.1} parent=0 // pred_fallthru
    _

// kernel: tpu_custom_call.1
$region0: #{tpu_custom_call.1}
  #allocation0 [shape = 'u32[]', space=smem, size = 0x4, offset = 0x4, fixed_abs, tag = 'smem constant byte address 0x4 - core index']
  #allocation1 [shape = 'u32[144,128]{1,0:T(1,128)}', space=vmem, size = 0x12000, scoped, tag = 'internal scratch']
  %s0 = inlined_call_operand.vmem [shape: f32[8,32], index: 0, kind: input, shape index: {}]
  %s1 = inlined_call_operand.vmem [shape: f32[8,32], index: 1, kind: input, shape index: {}]
  %s2 = inlined_call_operand.vmem [shape: s32[8,1], index: 2, kind: input, shape index: {}]
  %s3 = inlined_call_operand.vmem [shape: s32[1,8], index: 3, kind: input, shape index: {}]
  %s4 = inlined_call_operand.vmem [shape: f32[8,1], index: 4, kind: input, shape index: {}]
  %s5 = inlined_call_operand.vmem [shape: f32[1,8], index: 5, kind: input, shape index: {}]
  %s6 = inlined_call_operand.vmem [shape: f32[8,1], index: 6, kind: output, shape index: {}]
  %s7 = sld [smem:[#allocation0]]
  $region34: #{tpu_custom_call.1} parent=0
    _
  %s9 = ssub.s32 1, %s7
  %s10 = scalar_select 0, %s9, %s7
  // Predicated region
  $region2: #{tpu_custom_call.1} parent=0 // pred_check
    _
  $region3: #{tpu_custom_call.1} parent=0 // pred_check_branch
    %12 = sbr.rel (0) target = $region5
  $region4: #{tpu_custom_call.1} parent=0 // pred_region
    _
  $region5: #{tpu_custom_call.1} parent=0 // pred_fallthru
    _
  // Predicated region
  $region6: #{tpu_custom_call.1} parent=0 // pred_check
    _
  $region7: #{tpu_custom_call.1} parent=0 // pred_check_branch
    %14 = sbr.rel (0) target = $region9
  $region8: #{tpu_custom_call.1} parent=0 // pred_region
    _
  $region9: #{tpu_custom_call.1} parent=0 // pred_fallthru
    _
  // Predicated region
  $region10: #{tpu_custom_call.1} parent=0 // pred_check
    _
  $region11: #{tpu_custom_call.1} parent=0 // pred_check_branch
    %16 = sbr.rel (0) target = $region13
  $region12: #{tpu_custom_call.1} parent=0 // pred_region
    _
  $region13: #{tpu_custom_call.1} parent=0 // pred_fallthru
    _
  // Predicated region
  $region14: #{tpu_custom_call.1} parent=0 // pred_check
    _
  $region15: #{tpu_custom_call.1} parent=0 // pred_check_branch
    %18 = sbr.rel (0) target = $region17
  $region16: #{tpu_custom_call.1} parent=0 // pred_region
    _
  $region17: #{tpu_custom_call.1} parent=0 // pred_fallthru
    _
  // Predicated region
  $region18: #{tpu_custom_call.1} parent=0 // pred_check
    _
  $region19: #{tpu_custom_call.1} parent=0 // pred_check_branch
    %20 = sbr.rel (0) target = $region21
  $region20: #{tpu_custom_call.1} parent=0 // pred_region
    _
  $region21: #{tpu_custom_call.1} parent=0 // pred_fallthru
    _
  // Predicated region
  $region22: #{tpu_custom_call.1} parent=0 // pred_check
    _
  $region23: #{tpu_custom_call.1} parent=0 // pred_check_branch
    %22 = sbr.rel (0) target = $region25
  $region24: #{tpu_custom_call.1} parent=0 // pred_region
    _
  $region25: #{tpu_custom_call.1} parent=0 // pred_fallthru
    _
  %v23 = vld [vmem:[%s0] sm:$0xff]
  %v24 = vld [vmem:[%s1] sm:$0xff]
  %v25 = vld [vmem:[%s4] sm:$0xff]
  %v26 = vld [vmem:[%s5] sm:$0x1]
  %vm27 = vcmask 261120
  %v29 = vsel %vm27, %v23, 0
  %v32 = vsel %vm27, %v24, 0
  %34 = vmatprep.subr.mxu0 0.0
  %35 = vmatpush1.xpose.msra.mxu0 %v32
  %36 = vmatprep.subr.mxu0 0.0
  %37 = vmatpush1.xpose.msra.mxu0 0.0
  %38 = vmatprep.subr.mxu0 0.0
  %39 = vmatpush1.xpose.msra.mxu0 0.0
  %40 = vmatprep.subr.mxu0 0.0
  %41 = vmatpush1.xpose.msra.mxu0 0.0
  %42 = vmatprep.subr.mxu0 0.0
  %43 = vmatpush1.xpose.msra.mxu0 0.0
  %44 = vmatprep.subr.mxu0 0.0
  %45 = vmatpush1.xpose.msra.mxu0 0.0
  %46 = vmatprep.subr.mxu0 0.0
  %47 = vmatpush1.xpose.msra.mxu0 0.0
  %48 = vmatprep.subr.mxu0 0.0
  %49 = vmatpush1.xpose.msra.mxu0 0.0
  %50 = vmatprep.subr.mxu0 0.0
  %51 = vmatpush1.xpose.msra.mxu0 0.0
  %52 = vmatprep.subr.mxu0 0.0
  %53 = vmatpush1.xpose.msra.mxu0 0.0
  %54 = vmatprep.subr.mxu0 0.0
  %55 = vmatpush1.xpose.msra.mxu0 0.0
  %56 = vmatprep.subr.mxu0 0.0
  %57 = vmatpush1.xpose.msra.mxu0 0.0
  %58 = vmatprep.subr.mxu0 0.0
  %59 = vmatpush1.xpose.msra.mxu0 0.0
  %60 = vmatprep.subr.mxu0 0.0
  %61 = vmatpush1.xpose.msra.mxu0 0.0
  %62 = vmatprep.subr.mxu0 0.0
  %63 = vmatpush1.xpose.msra.mxu0 0.0
  %64 = vmatprep.subr.mxu0 0.0
  %65 = vmatpush1.xpose.msra.mxu0 0.0
  %66 = vmatprep.subr.mxu0 0.0
  %67 = vmatpush1.xpose.msra.mxu0 0.0
  %68 = vmatprep.subr.mxu0 0.0
  %69 = vmatpush1.xpose.msra.mxu0 0.0
  %70 = vmatprep.subr.mxu0 0.0
  %71 = vmatpush1.xpose.msra.mxu0 0.0
  %72 = vmatprep.subr.mxu0 0.0
  %73 = vmatpush1.xpose.msra.mxu0 0.0
  %74 = vmatprep.subr.mxu0 0.0
  %75 = vmatpush1.xpose.msra.mxu0 0.0
  %76 = vmatprep.subr.mxu0 0.0
  %77 = vmatpush1.xpose.msra.mxu0 0.0
  %78 = vmatprep.subr.mxu0 0.0
  %79 = vmatpush1.xpose.msra.mxu0 0.0
  %80 = vmatprep.subr.mxu0 0.0
  %81 = vmatpush1.xpose.msra.mxu0 0.0
  %82 = vmatprep.subr.mxu0 0.0
  %83 = vmatpush1.xpose.msra.mxu0 0.0
  %84 = vmatprep.subr.mxu0 0.0
  %85 = vmatpush1.xpose.msra.mxu0 0.0
  %86 = vmatprep.subr.mxu0 0.0
  %87 = vmatpush1.xpose.msra.mxu0 0.0
  %88 = vmatprep.subr.mxu0 0.0
  %89 = vmatpush1.xpose.msra.mxu0 0.0
  %90 = vmatprep.subr.mxu0 0.0
  %91 = vmatpush1.xpose.msra.mxu0 0.0
  %92 = vmatprep.subr.mxu0 0.0
  %93 = vmatpush1.xpose.msra.mxu0 0.0
  %94 = vmatprep.subr.mxu0 0.0
  %95 = vmatpush1.xpose.msra.mxu0 0.0
  %96 = vmatprep.subr.mxu0 0.0
  %97 = vmatpush1.xpose.msra.mxu0 0.0
  %98 = vmatprep.mubr.f32.mxu0 0.0
  %99 = vmatmul.mubr.f32.gmra.mrb[0].mxu0 %v29
  %v100 = vpop.f32.mrb[0].mxu0
  %v101 = vadd.f32 0.0, %v100
  %v102 = vpop.f32.mrb[0].mxu0
  %103 = vdwg.mxu0
  %105 = vset.pattern.permute.xlu0 0
  %106 = vperm.xlu0 %105, %v25
  %v107 = vpop.permute.xlu0 %106
  %v110 = vlaneseq
  %v111 = vshrl.u32 %v110, 7
  %v112 = vsub.s32 0, %v111
  %v113 = vrot.slane %v26, %v112
  %v115 = vadd.f32 %v107, %v113
  %v116 = vmul.f32 %v101, 2.0
  %v117 = vsub.f32 %v115, %v116
  %v118 = vmax.f32 %v117, 0.0
  %v119 = vrsqrt.pop %v118
  %v120 = vmul.f32 %v118, %v119
  %vm121 = vcmp.eq.f32.partialorder %v118, inf
  %v122 = vsel %vm121, %v118, %v120
  %vm123 = vcmp.eq.f32.partialorder %v118, 0.0
  %v124 = vand.u32 %v118, 2147483648
  %v125 = vsel %vm123, %v124, %v122
  %v126 = vld [vmem:[%s2] sm:$0xff]
  %v127 = vld [vmem:[%s3] sm:$0x1]
  %128 = vset.pattern.permute.xlu0 0
  %129 = vperm.xlu0 %128, %v126
  %v130 = vpop.permute.xlu0 %129
  %v131 = vlaneseq
  %v132 = vshrl.u32 %v131, 7
  %v133 = vsub.s32 0, %v132
  %v134 = vrot.slane %v127, %v133
  %vm135 = vcmp.ne.s32.totalorder %v130, %v134
  %v136 = vsub.f32 1.0, %v125
  %v137 = vmul.f32 %v136, 1.442695
  %v138 = vpow.pop %v137
  %v139 = vsel %vm135, %v138, 0.0
  %vm140 = vcmask 64512
  %v141 = vsel %vm140, %v139, 0.0
  %142 = vadd.xlane.f32.xlu0 %v141
  %v143 = vpop.xlane.xlu0 %142
  %vm144 = vcmask 7168
  %145 = vst.msk [vmem:[%s6] sm:$0xff] %vm144, %v143
  // Predicated region
  $region26: #{tpu_custom_call.1} parent=0 // pred_check
    _
  $region27: #{tpu_custom_call.1} parent=0 // pred_check_branch
    %147 = sbr.rel (0) target = $region29
  $region28: #{tpu_custom_call.1} parent=0 // pred_region
    _
  $region29: #{tpu_custom_call.1} parent=0 // pred_fallthru
    _
  // Predicated region
  $region30: #{tpu_custom_call.1} parent=0 // pred_check
    _
  $region31: #{tpu_custom_call.1} parent=0 // pred_check_branch
    %149 = sbr.rel (0) target = $region33
  $region32: #{tpu_custom_call.1} parent=0 // pred_region
    _
  $region33: #{tpu_custom_call.1} parent=0 // pred_fallthru
    _

</llo_original>
